<compile_context>
chip_gen: v6e
topology: v6e:2x2x1
jax: 0.10.0
libtpu: 0.0.40
codegen_flags: <defaults>
</compile_context>

<pallas_src>
import jax
import jax.numpy as jnp
import numpy as np
from jax import lax
from jax.experimental import pallas as pl
from jax.experimental.pallas import tpu as pltpu

INPUT_SIZE = 1
HIDDEN = 32
CHUNK = 512  # max timesteps per grid step (multiple of 128 so chunked blocks tile cleanly)


def _make_kernel(TC, T_total, T_pad):
    need_mask = (T_pad != T_total)  # only the last chunk may contain padded steps

    def kernel(x_ref, h0_ref, wih_ref, whh_ref, b_ref, wout_ref, bout_ref,
               y_ref, hfin_ref, xproj_ref, hstash_ref, h_carry):
        c = pl.program_id(0)

        # First chunk: load the initial hidden state into the carried scratch.
        @pl.when(c == 0)
        def _():
            h_carry[...] = h0_ref[...].astype(jnp.float32)

        # ---- chunk prologue: hoist the input projection off the serial path ----
        # xproj[t, b, :] = x[b, t] * W_ih + (b_ih + b_hh)      (valid because I == 1)
        x_tb = x_ref[...].astype(jnp.float32).T                    # (TC, B)
        xproj_ref[...] = (x_tb[:, :, None] * wih_ref[...][None, :, :]
                          + b_ref[...][None, :, :])                # (TC, B, H)

        whh = whh_ref[...]                                         # (H, H), resident
        h_init = h_carry[...]                                      # (B, H)
        chunk_base = c * TC

        # ---- serial recurrence over the chunk's local timesteps ----
        def step(t, h_prev):
            pre = xproj_ref[t] + jnp.dot(h_prev, whh,
                                         preferred_element_type=jnp.float32)
            h_new = jnp.tanh(pre)
            if need_mask:
                # padded steps (t_global >= T) must not advance the hidden state
                h_new = jnp.where(chunk_base + t < T_total, h_new, h_prev)
            hstash_ref[t] = h_new
            return h_new

        unroll = True if TC <= 32 else 8
        h_last = lax.fori_loop(0, TC, step, h_init, unroll=unroll)

        h_carry[...] = h_last
        hfin_ref[...] = h_last.astype(hfin_ref.dtype)

        # ---- chunk epilogue: Linear(32, 1) for the whole chunk, lane-dense output ----
        hst = hstash_ref[...]                                      # (TC, B, H)
        y_tb = jnp.sum(hst * wout_ref[...], axis=-1)               # (TC, B)
        y_ref[...] = (y_tb.T + bout_ref[0, 0]).astype(y_ref.dtype)  # (B, TC)

    return kernel


def rnn_forward(x, h_state, params):
    """x: (B, T, 1) float32, h_state: (1, B, H) float32 -> ((B, T, 1), (1, B, H))."""
    B, T, I = x.shape
    assert I == INPUT_SIZE == 1, "kernel specialization requires input_size == 1"
    H = HIDDEN

    if T <= CHUNK:
        TC, T_pad = T, T
    else:
        TC = CHUNK
        T_pad = ((T + TC - 1) // TC) * TC
    num_chunks = T_pad // TC

    w_ih, w_hh, b_ih, b_hh, w_out, b_out = (
        params["w_ih"], params["w_hh"], params["b_ih"], params["b_hh"],
        params["w_out"], params["b_out"])

    # No wrapper transposes: squeeze trailing singleton (free reshape), pad time if needed.
    x_bt = x.reshape(B, T)
    if T_pad != T:
        x_bt = jnp.pad(x_bt, ((0, 0), (0, T_pad - T)))

    h0 = h_state[0]                               # (B, H)
    wih = w_ih.reshape(1, H)                      # (1, H)   (W_ih is (H, 1))
    whh = w_hh.T                                  # (H, H)   so h @ whh == h @ W_hh^T
    b_comb = (b_ih + b_hh).reshape(1, H)          # (1, H)
    wout = w_out.reshape(1, H)                    # (1, H)
    bout = b_out.reshape(1, 1)                    # (1, 1) scalar -> SMEM

    kernel = _make_kernel(TC, T, T_pad)

    y_bt, h_fin = pl.pallas_call(
        kernel,
        out_shape=(jax.ShapeDtypeStruct((B, T_pad), jnp.float32),
                   jax.ShapeDtypeStruct((B, H), jnp.float32)),
        grid_spec=pltpu.PrefetchScalarGridSpec(
            num_scalar_prefetch=0,
            grid=(num_chunks,),
            in_specs=[
                pl.BlockSpec((B, TC), lambda c: (0, c)),        # x chunk (B, TC)
                pl.BlockSpec((B, H), lambda c: (0, 0)),         # h0
                pl.BlockSpec((1, H), lambda c: (0, 0)),         # W_ih (row)
                pl.BlockSpec((H, H), lambda c: (0, 0)),         # W_hh^T
                pl.BlockSpec((1, H), lambda c: (0, 0)),         # b_ih + b_hh
                pl.BlockSpec((1, H), lambda c: (0, 0)),         # W_out (row)
                pl.BlockSpec(memory_space=pltpu.MemorySpace.SMEM),  # b_out scalar
            ],
            out_specs=[
                pl.BlockSpec((B, TC), lambda c: (0, c)),        # y chunk, lane-dense
                pl.BlockSpec((B, H), lambda c: (0, 0)),         # final hidden state
            ],
            scratch_shapes=[
                pltpu.VMEM((TC, B, H), jnp.float32),   # hoisted input projection
                pltpu.VMEM((TC, B, H), jnp.float32),   # h stash for chunk epilogue
                pltpu.VMEM((B, H), jnp.float32),       # carried hidden state
            ],
        ),
        compiler_params=pltpu.CompilerParams(
            dimension_semantics=("arbitrary",),        # time chunks are sequential
            vmem_limit_bytes=32 * 1024 * 1024,         # plenty of headroom on v7x's 64 MiB
        ),
    )(x_bt, h0, wih, whh, b_comb, wout, bout)

    y = y_bt[:, :T].reshape(B, T, 1)
    return y, h_fin[None, :, :]                       # (1, B, H)


def rnn_reference(x, h_state, params):
    """Pure-JAX reference mirroring torch.nn.RNN(tanh) + Linear semantics."""
    w_ih, w_hh, b_ih, b_hh, w_out, b_out = (
        params["w_ih"], params["w_hh"], params["b_ih"], params["b_hh"],
        params["w_out"], params["b_out"])
    h = h_state[0]
    outs = []
    for t in range(x.shape[1]):
        x_t = x[:, t, :]
        h = jnp.tanh(x_t @ w_ih.T + b_ih + h @ w_hh.T + b_hh)
        outs.append(h @ w_out.T + b_out)
    return jnp.stack(outs, axis=1), h[None]


def init_params(key):
    """Deterministic params with PyTorch-style uniform(-1/sqrt(H), 1/sqrt(H)) init."""
    ks = jax.random.split(key, 6)
    bound = 1.0 / np.sqrt(HIDDEN)
    u = lambda k, shp: jax.random.uniform(k, shp, jnp.float32, -bound, bound)
    return {
        "w_ih": u(ks[0], (HIDDEN, INPUT_SIZE)),
        "w_hh": u(ks[1], (HIDDEN, HIDDEN)),
        "b_ih": u(ks[2], (HIDDEN,)),
        "b_hh": u(ks[3], (HIDDEN,)),
        "w_out": u(ks[4], (1, HIDDEN)),
        "b_out": u(ks[5], (1,)),
    }


if __name__ == "__main__":
    key = jax.random.PRNGKey(0)
    k_param, k_x, k_h = jax.random.split(key, 3)

    B, T = 8, 8
    params = init_params(k_param)
    x = jax.random.normal(k_x, (B, T, INPUT_SIZE), jnp.float32)
    h_state = jax.random.normal(k_h, (1, B, HIDDEN), jnp.float32)

    y, h_out = jax.jit(rnn_forward)(x, h_state, params)
    y = jax.block_until_ready(y)
    h_out = jax.block_until_ready(h_out)

    y_ref, h_ref = rnn_reference(x, h_state, params)
    np.testing.assert_allclose(np.asarray(y), np.asarray(y_ref), rtol=1e-5, atol=1e-5)
    np.testing.assert_allclose(np.asarray(h_out), np.asarray(h_ref), rtol=1e-5, atol=1e-5)

    assert y.shape == (B, T, 1) and h_out.shape == (1, B, HIDDEN)
    print("KERNEL_OK")
</pallas_src>

<mosaic_0001>
module attributes {stable_mosaic.version = 11 : i64} {
  func.func @kernel(%arg0: i32, %arg1: memref<8x8xf32, #tpu.memory_space<vmem>>, %arg2: memref<8x32xf32, #tpu.memory_space<vmem>>, %arg3: memref<1x32xf32, #tpu.memory_space<vmem>>, %arg4: memref<32x32xf32, #tpu.memory_space<vmem>>, %arg5: memref<1x32xf32, #tpu.memory_space<vmem>>, %arg6: memref<1x32xf32, #tpu.memory_space<vmem>>, %arg7: memref<1x1xf32, #tpu.memory_space<smem>>, %arg8: memref<8x8xf32, #tpu.memory_space<vmem>>, %arg9: memref<8x32xf32, #tpu.memory_space<vmem>>, %arg10: memref<8x8x32xf32, #tpu.memory_space<vmem>>, %arg11: memref<8x8x32xf32, #tpu.memory_space<vmem>>, %arg12: memref<8x32xf32, #tpu.memory_space<vmem>>) attributes {dimension_semantics = [#tpu.dimension_semantics<arbitrary>], iteration_bounds = array<i64: 1>, scalar_prefetch = 0 : i64, scratch_operands = 3 : i64, tpu.core_type = #tpu.core_type<tc>, window_params = [{transform_indices = @transform_0, window_bounds = array<i64: 8, 8>}, {pipeline_mode = #tpu.pipeline_mode<synchronous>, transform_indices = @transform_1, window_bounds = array<i64: 8, 32>}, {pipeline_mode = #tpu.pipeline_mode<synchronous>, transform_indices = @transform_2, window_bounds = array<i64: 1, 32>}, {pipeline_mode = #tpu.pipeline_mode<synchronous>, transform_indices = @transform_3, window_bounds = array<i64: 32, 32>}, {pipeline_mode = #tpu.pipeline_mode<synchronous>, transform_indices = @transform_4, window_bounds = array<i64: 1, 32>}, {pipeline_mode = #tpu.pipeline_mode<synchronous>, transform_indices = @transform_5, window_bounds = array<i64: 1, 32>}, {transform_indices = @transform_6, window_bounds = array<i64: 1, 1>}, {transform_indices = @transform_7, window_bounds = array<i64: 8, 8>}, {pipeline_mode = #tpu.pipeline_mode<synchronous>, transform_indices = @transform_8, window_bounds = array<i64: 8, 32>}]} {
    %c0_i32 = arith.constant 0 : i32
    %0 = arith.cmpi eq, %arg0, %c0_i32 : i32
    %1 = arith.extui %0 : i1 to i32
    %c0_i32_0 = arith.constant 0 : i32
    %2 = arith.cmpi ne, %1, %c0_i32_0 : i32
    scf.if %2 {
      %c0_67 = arith.constant 0 : index
      %c0_68 = arith.constant 0 : index
      %111 = vector.load %arg2[%c0_67, %c0_68] : memref<8x32xf32, #tpu.memory_space<vmem>>, vector<8x32xf32>
      %c0_69 = arith.constant 0 : index
      %c0_70 = arith.constant 0 : index
      %112 = vector.load %arg12[%c0_69, %c0_70] : memref<8x32xf32, #tpu.memory_space<vmem>>, vector<8x32xf32>
      tpu.vector_store %arg12[%c0_69, %c0_70], %111 {strides = array<i32>} : memref<8x32xf32, #tpu.memory_space<vmem>>, vector<8x32xf32>,
    } else {
    }
    %c0 = arith.constant 0 : index
    %c0_1 = arith.constant 0 : index
    %3 = vector.load %arg1[%c0, %c0_1] : memref<8x8xf32, #tpu.memory_space<vmem>>, vector<8x8xf32>
    %4 = tpu.transpose %3, [1, 0] : vector<8x8xf32> -> vector<8x8xf32>
    %5 = vector.shape_cast %4 : vector<8x8xf32> to vector<8x8x1xf32>
    %c0_2 = arith.constant 0 : index
    %c0_3 = arith.constant 0 : index
    %6 = vector.load %arg3[%c0_2, %c0_3] : memref<1x32xf32, #tpu.memory_space<vmem>>, vector<1x32xf32>
    %7 = vector.shape_cast %6 : vector<1x32xf32> to vector<1x1x32xf32>
    %8 = vector.broadcast %5 : vector<8x8x1xf32> to vector<8x8x32xf32>
    %9 = vector.broadcast %7 : vector<1x1x32xf32> to vector<8x8x32xf32>
    %10 = arith.mulf %8, %9 : vector<8x8x32xf32>
    %c0_4 = arith.constant 0 : index
    %c0_5 = arith.constant 0 : index
    %11 = vector.load %arg5[%c0_4, %c0_5] : memref<1x32xf32, #tpu.memory_space<vmem>>, vector<1x32xf32>
    %12 = vector.shape_cast %11 : vector<1x32xf32> to vector<1x1x32xf32>
    %13 = vector.broadcast %12 : vector<1x1x32xf32> to vector<8x8x32xf32>
    %14 = arith.addf %10, %13 : vector<8x8x32xf32>
    %c0_6 = arith.constant 0 : index
    %c0_7 = arith.constant 0 : index
    %c0_8 = arith.constant 0 : index
    %15 = vector.load %arg10[%c0_6, %c0_7, %c0_8] : memref<8x8x32xf32, #tpu.memory_space<vmem>>, vector<8x8x32xf32>
    tpu.vector_store %arg10[%c0_6, %c0_7, %c0_8], %14 {strides = array<i32>} : memref<8x8x32xf32, #tpu.memory_space<vmem>>, vector<8x8x32xf32>,
    %c0_9 = arith.constant 0 : index
    %c0_10 = arith.constant 0 : index
    %16 = vector.load %arg4[%c0_9, %c0_10] : memref<32x32xf32, #tpu.memory_space<vmem>>, vector<32x32xf32>
    %c0_11 = arith.constant 0 : index
    %c0_12 = arith.constant 0 : index
    %17 = vector.load %arg12[%c0_11, %c0_12] : memref<8x32xf32, #tpu.memory_space<vmem>>, vector<8x32xf32>
    %c0_i32_13 = arith.constant 0 : i32
    %18 = arith.index_cast %c0_i32_13 : i32 to index
    %c0_14 = arith.constant 0 : index
    %c0_15 = arith.constant 0 : index
    %19 = vector.load %arg10[%18, %c0_14, %c0_15] : memref<8x8x32xf32, #tpu.memory_space<vmem>>, vector<1x8x32xf32>
    %20 = vector.shape_cast %19 : vector<1x8x32xf32> to vector<8x32xf32>
    %cst = arith.constant dense<0.000000e+00> : vector<8x32xf32>
    %21 = tpu.matmul %17, %16, %cst {dimension_numbers = #tpu.dot_dimension_numbers<[1], [0], [0], [1], [0, 0, 1, 1], [], []>} : vector<8x32xf32>, vector<32x32xf32>, vector<8x32xf32> -> vector<8x32xf32>
    %22 = arith.addf %20, %21 : vector<8x32xf32>
    %23 = math.tanh %22 : vector<8x32xf32>
    %24 = arith.index_cast %c0_i32_13 : i32 to index
    %c0_16 = arith.constant 0 : index
    %c0_17 = arith.constant 0 : index
    %25 = vector.load %arg11[%24, %c0_16, %c0_17] : memref<8x8x32xf32, #tpu.memory_space<vmem>>, vector<1x8x32xf32>
    %26 = vector.shape_cast %25 : vector<1x8x32xf32> to vector<8x32xf32>
    %27 = vector.shape_cast %23 : vector<8x32xf32> to vector<1x8x32xf32>
    tpu.vector_store %arg11[%24, %c0_16, %c0_17], %27 {strides = array<i32>} : memref<8x8x32xf32, #tpu.memory_space<vmem>>, vector<1x8x32xf32>,
    %c1_i32 = arith.constant 1 : i32
    %28 = arith.index_cast %c1_i32 : i32 to index
    %c0_18 = arith.constant 0 : index
    %c0_19 = arith.constant 0 : index
    %29 = vector.load %arg10[%28, %c0_18, %c0_19] : memref<8x8x32xf32, #tpu.memory_space<vmem>>, vector<1x8x32xf32>
    %30 = vector.shape_cast %29 : vector<1x8x32xf32> to vector<8x32xf32>
    %cst_20 = arith.constant dense<0.000000e+00> : vector<8x32xf32>
    %31 = tpu.matmul %23, %16, %cst_20 {dimension_numbers = #tpu.dot_dimension_numbers<[1], [0], [0], [1], [0, 0, 1, 1], [], []>} : vector<8x32xf32>, vector<32x32xf32>, vector<8x32xf32> -> vector<8x32xf32>
    %32 = arith.addf %30, %31 : vector<8x32xf32>
    %33 = math.tanh %32 : vector<8x32xf32>
    %34 = arith.index_cast %c1_i32 : i32 to index
    %c0_21 = arith.constant 0 : index
    %c0_22 = arith.constant 0 : index
    %35 = vector.load %arg11[%34, %c0_21, %c0_22] : memref<8x8x32xf32, #tpu.memory_space<vmem>>, vector<1x8x32xf32>
    %36 = vector.shape_cast %35 : vector<1x8x32xf32> to vector<8x32xf32>
    %37 = vector.shape_cast %33 : vector<8x32xf32> to vector<1x8x32xf32>
    tpu.vector_store %arg11[%34, %c0_21, %c0_22], %37 {strides = array<i32>} : memref<8x8x32xf32, #tpu.memory_space<vmem>>, vector<1x8x32xf32>,
    %c2_i32 = arith.constant 2 : i32
    %38 = arith.index_cast %c2_i32 : i32 to index
    %c0_23 = arith.constant 0 : index
    %c0_24 = arith.constant 0 : index
    %39 = vector.load %arg10[%38, %c0_23, %c0_24] : memref<8x8x32xf32, #tpu.memory_space<vmem>>, vector<1x8x32xf32>
    %40 = vector.shape_cast %39 : vector<1x8x32xf32> to vector<8x32xf32>
    %cst_25 = arith.constant dense<0.000000e+00> : vector<8x32xf32>
    %41 = tpu.matmul %33, %16, %cst_25 {dimension_numbers = #tpu.dot_dimension_numbers<[1], [0], [0], [1], [0, 0, 1, 1], [], []>} : vector<8x32xf32>, vector<32x32xf32>, vector<8x32xf32> -> vector<8x32xf32>
    %42 = arith.addf %40, %41 : vector<8x32xf32>
    %43 = math.tanh %42 : vector<8x32xf32>
    %44 = arith.index_cast %c2_i32 : i32 to index
    %c0_26 = arith.constant 0 : index
    %c0_27 = arith.constant 0 : index
    %45 = vector.load %arg11[%44, %c0_26, %c0_27] : memref<8x8x32xf32, #tpu.memory_space<vmem>>, vector<1x8x32xf32>
    %46 = vector.shape_cast %45 : vector<1x8x32xf32> to vector<8x32xf32>
    %47 = vector.shape_cast %43 : vector<8x32xf32> to vector<1x8x32xf32>
    tpu.vector_store %arg11[%44, %c0_26, %c0_27], %47 {strides = array<i32>} : memref<8x8x32xf32, #tpu.memory_space<vmem>>, vector<1x8x32xf32>,
    %c3_i32 = arith.constant 3 : i32
    %48 = arith.index_cast %c3_i32 : i32 to index
    %c0_28 = arith.constant 0 : index
    %c0_29 = arith.constant 0 : index
    %49 = vector.load %arg10[%48, %c0_28, %c0_29] : memref<8x8x32xf32, #tpu.memory_space<vmem>>, vector<1x8x32xf32>
    %50 = vector.shape_cast %49 : vector<1x8x32xf32> to vector<8x32xf32>
    %cst_30 = arith.constant dense<0.000000e+00> : vector<8x32xf32>
    %51 = tpu.matmul %43, %16, %cst_30 {dimension_numbers = #tpu.dot_dimension_numbers<[1], [0], [0], [1], [0, 0, 1, 1], [], []>} : vector<8x32xf32>, vector<32x32xf32>, vector<8x32xf32> -> vector<8x32xf32>
    %52 = arith.addf %50, %51 : vector<8x32xf32>
    %53 = math.tanh %52 : vector<8x32xf32>
    %54 = arith.index_cast %c3_i32 : i32 to index
    %c0_31 = arith.constant 0 : index
    %c0_32 = arith.constant 0 : index
    %55 = vector.load %arg11[%54, %c0_31, %c0_32] : memref<8x8x32xf32, #tpu.memory_space<vmem>>, vector<1x8x32xf32>
    %56 = vector.shape_cast %55 : vector<1x8x32xf32> to vector<8x32xf32>
    %57 = vector.shape_cast %53 : vector<8x32xf32> to vector<1x8x32xf32>
    tpu.vector_store %arg11[%54, %c0_31, %c0_32], %57 {strides = array<i32>} : memref<8x8x32xf32, #tpu.memory_space<vmem>>, vector<1x8x32xf32>,
    %c4_i32 = arith.constant 4 : i32
    %58 = arith.index_cast %c4_i32 : i32 to index
    %c0_33 = arith.constant 0 : index
    %c0_34 = arith.constant 0 : index
    %59 = vector.load %arg10[%58, %c0_33, %c0_34] : memref<8x8x32xf32, #tpu.memory_space<vmem>>, vector<1x8x32xf32>
    %60 = vector.shape_cast %59 : vector<1x8x32xf32> to vector<8x32xf32>
    %cst_35 = arith.constant dense<0.000000e+00> : vector<8x32xf32>
    %61 = tpu.matmul %53, %16, %cst_35 {dimension_numbers = #tpu.dot_dimension_numbers<[1], [0], [0], [1], [0, 0, 1, 1], [], []>} : vector<8x32xf32>, vector<32x32xf32>, vector<8x32xf32> -> vector<8x32xf32>
    %62 = arith.addf %60, %61 : vector<8x32xf32>
    %63 = math.tanh %62 : vector<8x32xf32>
    %64 = arith.index_cast %c4_i32 : i32 to index
    %c0_36 = arith.constant 0 : index
    %c0_37 = arith.constant 0 : index
    %65 = vector.load %arg11[%64, %c0_36, %c0_37] : memref<8x8x32xf32, #tpu.memory_space<vmem>>, vector<1x8x32xf32>
    %66 = vector.shape_cast %65 : vector<1x8x32xf32> to vector<8x32xf32>
    %67 = vector.shape_cast %63 : vector<8x32xf32> to vector<1x8x32xf32>
    tpu.vector_store %arg11[%64, %c0_36, %c0_37], %67 {strides = array<i32>} : memref<8x8x32xf32, #tpu.memory_space<vmem>>, vector<1x8x32xf32>,
    %c5_i32 = arith.constant 5 : i32
    %68 = arith.index_cast %c5_i32 : i32 to index
    %c0_38 = arith.constant 0 : index
    %c0_39 = arith.constant 0 : index
    %69 = vector.load %arg10[%68, %c0_38, %c0_39] : memref<8x8x32xf32, #tpu.memory_space<vmem>>, vector<1x8x32xf32>
    %70 = vector.shape_cast %69 : vector<1x8x32xf32> to vector<8x32xf32>
    %cst_40 = arith.constant dense<0.000000e+00> : vector<8x32xf32>
    %71 = tpu.matmul %63, %16, %cst_40 {dimension_numbers = #tpu.dot_dimension_numbers<[1], [0], [0], [1], [0, 0, 1, 1], [], []>} : vector<8x32xf32>, vector<32x32xf32>, vector<8x32xf32> -> vector<8x32xf32>
    %72 = arith.addf %70, %71 : vector<8x32xf32>
    %73 = math.tanh %72 : vector<8x32xf32>
    %74 = arith.index_cast %c5_i32 : i32 to index
    %c0_41 = arith.constant 0 : index
    %c0_42 = arith.constant 0 : index
    %75 = vector.load %arg11[%74, %c0_41, %c0_42] : memref<8x8x32xf32, #tpu.memory_space<vmem>>, vector<1x8x32xf32>
    %76 = vector.shape_cast %75 : vector<1x8x32xf32> to vector<8x32xf32>
    %77 = vector.shape_cast %73 : vector<8x32xf32> to vector<1x8x32xf32>
    tpu.vector_store %arg11[%74, %c0_41, %c0_42], %77 {strides = array<i32>} : memref<8x8x32xf32, #tpu.memory_space<vmem>>, vector<1x8x32xf32>,
    %c6_i32 = arith.constant 6 : i32
    %78 = arith.index_cast %c6_i32 : i32 to index
    %c0_43 = arith.constant 0 : index
    %c0_44 = arith.constant 0 : index
    %79 = vector.load %arg10[%78, %c0_43, %c0_44] : memref<8x8x32xf32, #tpu.memory_space<vmem>>, vector<1x8x32xf32>
    %80 = vector.shape_cast %79 : vector<1x8x32xf32> to vector<8x32xf32>
    %cst_45 = arith.constant dense<0.000000e+00> : vector<8x32xf32>
    %81 = tpu.matmul %73, %16, %cst_45 {dimension_numbers = #tpu.dot_dimension_numbers<[1], [0], [0], [1], [0, 0, 1, 1], [], []>} : vector<8x32xf32>, vector<32x32xf32>, vector<8x32xf32> -> vector<8x32xf32>
    %82 = arith.addf %80, %81 : vector<8x32xf32>
    %83 = math.tanh %82 : vector<8x32xf32>
    %84 = arith.index_cast %c6_i32 : i32 to index
    %c0_46 = arith.constant 0 : index
    %c0_47 = arith.constant 0 : index
    %85 = vector.load %arg11[%84, %c0_46, %c0_47] : memref<8x8x32xf32, #tpu.memory_space<vmem>>, vector<1x8x32xf32>
    %86 = vector.shape_cast %85 : vector<1x8x32xf32> to vector<8x32xf32>
    %87 = vector.shape_cast %83 : vector<8x32xf32> to vector<1x8x32xf32>
    tpu.vector_store %arg11[%84, %c0_46, %c0_47], %87 {strides = array<i32>} : memref<8x8x32xf32, #tpu.memory_space<vmem>>, vector<1x8x32xf32>,
    %c7_i32 = arith.constant 7 : i32
    %88 = arith.index_cast %c7_i32 : i32 to index
    %c0_48 = arith.constant 0 : index
    %c0_49 = arith.constant 0 : index
    %89 = vector.load %arg10[%88, %c0_48, %c0_49] : memref<8x8x32xf32, #tpu.memory_space<vmem>>, vector<1x8x32xf32>
    %90 = vector.shape_cast %89 : vector<1x8x32xf32> to vector<8x32xf32>
    %cst_50 = arith.constant dense<0.000000e+00> : vector<8x32xf32>
    %91 = tpu.matmul %83, %16, %cst_50 {dimension_numbers = #tpu.dot_dimension_numbers<[1], [0], [0], [1], [0, 0, 1, 1], [], []>} : vector<8x32xf32>, vector<32x32xf32>, vector<8x32xf32> -> vector<8x32xf32>
    %92 = arith.addf %90, %91 : vector<8x32xf32>
    %93 = math.tanh %92 : vector<8x32xf32>
    %94 = arith.index_cast %c7_i32 : i32 to index
    %c0_51 = arith.constant 0 : index
    %c0_52 = arith.constant 0 : index
    %95 = vector.load %arg11[%94, %c0_51, %c0_52] : memref<8x8x32xf32, #tpu.memory_space<vmem>>, vector<1x8x32xf32>
    %96 = vector.shape_cast %95 : vector<1x8x32xf32> to vector<8x32xf32>
    %97 = vector.shape_cast %93 : vector<8x32xf32> to vector<1x8x32xf32>
    tpu.vector_store %arg11[%94, %c0_51, %c0_52], %97 {strides = array<i32>} : memref<8x8x32xf32, #tpu.memory_space<vmem>>, vector<1x8x32xf32>,
    %c8_i32 = arith.constant 8 : i32
    %c0_53 = arith.constant 0 : index
    %c0_54 = arith.constant 0 : index
    %98 = vector.load %arg12[%c0_53, %c0_54] : memref<8x32xf32, #tpu.memory_space<vmem>>, vector<8x32xf32>
    tpu.vector_store %arg12[%c0_53, %c0_54], %93 {strides = array<i32>} : memref<8x32xf32, #tpu.memory_space<vmem>>, vector<8x32xf32>,
    %c0_55 = arith.constant 0 : index
    %c0_56 = arith.constant 0 : index
    %99 = vector.load %arg9[%c0_55, %c0_56] : memref<8x32xf32, #tpu.memory_space<vmem>>, vector<8x32xf32>
    tpu.vector_store %arg9[%c0_55, %c0_56], %93 {strides = array<i32>} : memref<8x32xf32, #tpu.memory_space<vmem>>, vector<8x32xf32>,
    %c0_57 = arith.constant 0 : index
    %c0_58 = arith.constant 0 : index
    %c0_59 = arith.constant 0 : index
    %100 = vector.load %arg11[%c0_57, %c0_58, %c0_59] : memref<8x8x32xf32, #tpu.memory_space<vmem>>, vector<8x8x32xf32>
    %c0_60 = arith.constant 0 : index
    %c0_61 = arith.constant 0 : index
    %101 = vector.load %arg6[%c0_60, %c0_61] : memref<1x32xf32, #tpu.memory_space<vmem>>, vector<1x32xf32>
    %102 = vector.shape_cast %101 : vector<1x32xf32> to vector<1x1x32xf32>
    %103 = vector.broadcast %102 : vector<1x1x32xf32> to vector<8x8x32xf32>
    %104 = arith.mulf %100, %103 : vector<8x8x32xf32>
    %cst_62 = arith.constant dense<0.000000e+00> : vector<8x8xf32>
    %105 = vector.multi_reduction <add>, %104, %cst_62 [2] : vector<8x8x32xf32> to vector<8x8xf32>
    %106 = tpu.transpose %105, [1, 0] : vector<8x8xf32> -> vector<8x8xf32>
    %c0_63 = arith.constant 0 : index
    %c0_64 = arith.constant 0 : index
    %107 = memref.load %arg7[%c0_63, %c0_64] : memref<1x1xf32, #tpu.memory_space<smem>>
    %108 = vector.broadcast %107 : f32 to vector<8x8xf32>
    %109 = arith.addf %106, %108 : vector<8x8xf32>
    %c0_65 = arith.constant 0 : index
    %c0_66 = arith.constant 0 : index
    %110 = vector.load %arg8[%c0_65, %c0_66] : memref<8x8xf32, #tpu.memory_space<vmem>>, vector<8x8xf32>
    tpu.vector_store %arg8[%c0_65, %c0_66], %109 {strides = array<i32>} : memref<8x8xf32, #tpu.memory_space<vmem>>, vector<8x8xf32>,
    return
  }
  func.func @transform_0(%arg0: i32) -> (i32, i32) {
    %c0_i32 = arith.constant 0 : i32
    %c0_i32_0 = arith.constant 0 : i32
    return %c0_i32, %arg0 : i32, i32
  }
  func.func @transform_1(%arg0: i32) -> (i32, i32) {
    %c0_i32 = arith.constant 0 : i32
    %c0_i32_0 = arith.constant 0 : i32
    %c0_i32_1 = arith.constant 0 : i32
    return %c0_i32, %c0_i32_0 : i32, i32
  }
  func.func @transform_2(%arg0: i32) -> (i32, i32) {
    %c0_i32 = arith.constant 0 : i32
    %c0_i32_0 = arith.constant 0 : i32
    %c0_i32_1 = arith.constant 0 : i32
    return %c0_i32, %c0_i32_0 : i32, i32
  }
  func.func @transform_3(%arg0: i32) -> (i32, i32) {
    %c0_i32 = arith.constant 0 : i32
    %c0_i32_0 = arith.constant 0 : i32
    %c0_i32_1 = arith.constant 0 : i32
    return %c0_i32, %c0_i32_0 : i32, i32
  }
  func.func @transform_4(%arg0: i32) -> (i32, i32) {
    %c0_i32 = arith.constant 0 : i32
    %c0_i32_0 = arith.constant 0 : i32
    %c0_i32_1 = arith.constant 0 : i32
    return %c0_i32, %c0_i32_0 : i32, i32
  }
  func.func @transform_5(%arg0: i32) -> (i32, i32) {
    %c0_i32 = arith.constant 0 : i32
    %c0_i32_0 = arith.constant 0 : i32
    %c0_i32_1 = arith.constant 0 : i32
    return %c0_i32, %c0_i32_0 : i32, i32
  }
  func.func @transform_6(%arg0: i32) -> (i32, i32) {
    %c0_i32 = arith.constant 0 : i32
    %c0_i32_0 = arith.constant 0 : i32
    %c0_i32_1 = arith.constant 0 : i32
    return %c0_i32, %c0_i32_0 : i32, i32
  }
  func.func @transform_7(%arg0: i32) -> (i32, i32) {
    %c0_i32 = arith.constant 0 : i32
    %c0_i32_0 = arith.constant 0 : i32
    return %c0_i32, %arg0 : i32, i32
  }
  func.func @transform_8(%arg0: i32) -> (i32, i32) {
    %c0_i32 = arith.constant 0 : i32
    %c0_i32_0 = arith.constant 0 : i32
    %c0_i32_1 = arith.constant 0 : i32
    return %c0_i32, %c0_i32_0 : i32, i32
  }
}

</mosaic_0001>

<llo_original>
// kernel: rnn_forward.1
$region0: #{rnn_forward.1}
  #allocation0 [shape = 'u32[]', space=smem, size = 0x4, offset = 0x4, fixed_abs, tag = 'smem constant byte address 0x4 - core index']
  #allocation1 [shape = 'u32[144,128]{1,0:T(1,128)}', space=vmem, size = 0x12000, scoped, tag = 'internal scratch']
  #allocation2 [shape = 'f32[8,8,32]{2,1,0:T(8,128)}', space=vmem, size = 0x8000, scoped, tag = 'scratch operand']
  #allocation3 [shape = 'f32[8,8,32]{2,1,0:T(8,128)}', space=vmem, size = 0x8000, scoped, tag = 'scratch operand']
  #allocation4 [shape = 'f32[8,32]{1,0:T(8,128)}', space=vmem, size = 0x1000, scoped, tag = 'scratch operand']
  #allocation5 [shape = 'f32[1,1]{1,0:T(1,128)S(6)}', space=smem, size = 0x200, scoped, tag = 'scoped memory for rnn_forward.1']
  %s0 = inlined_call_operand.vmem [shape: f32[8,8], index: 0, kind: input, shape index: {}]
  %s1 = inlined_call_operand.vmem [shape: f32[8,32], index: 1, kind: input, shape index: {}]
  %s2 = inlined_call_operand.vmem [shape: f32[1,32], index: 2, kind: input, shape index: {}]
  %s3 = inlined_call_operand.vmem [shape: f32[32,32], index: 3, kind: input, shape index: {}]
  %s4 = inlined_call_operand.vmem [shape: f32[1,32], index: 4, kind: input, shape index: {}]
  %s5 = inlined_call_operand.vmem [shape: f32[1,32], index: 5, kind: input, shape index: {}]
  %s6 = inlined_call_operand.<no memory space> [shape: f32[1,1], index: 6, kind: input, shape index: {}]
  %s7 = inlined_call_operand.hbm [shape: f32[8,8], index: 7, kind: output, shape index: {0}]
  %s8 = inlined_call_operand.hbm [shape: f32[8,32], index: 8, kind: output, shape index: {1}]
  %9 = xla_tuple %s7, %s8
  %s10 = sld [smem:[#allocation0]]
  $region50: #{rnn_forward.1} parent=0
    _
  %s12 = ssub.s32 1, %s10
  %s13 = scalar_select 0, %s12, %s10
  %14 = sst [smem:[#allocation5]] %s6
  $region1: #{rnn_forward.1} parent=0
    #allocation6 [shape = 'u8[4096]{0}', space=vmem, size = 0x1000, scoped, tag = 'output window, operand 0, single buffered']
    #allocation7 [shape = 's32[1]{0}', space=sflag, size = 0x4, scoped, tag = 'scoped memory for rnn_forward.1']
    #allocation8 [shape = 'u8[4096]{0}', space=vmem, size = 0x1000, scoped, tag = 'output window, operand 1, single buffered']
    #allocation9 [shape = 's32[1]{0}', space=sflag, size = 0x4, scoped, tag = 'scoped memory for rnn_forward.1']
    %15 = vsyncpa [#allocation7], 0
    %16 = vsyncpa [#allocation9], 0
    // Predicated region
    $region2: #{rnn_forward.1} parent=1 // pred_check
      _
    $region3: #{rnn_forward.1} parent=1 // pred_check_branch
      %18 = sbr.rel (0) target = $region5
    $region4: #{rnn_forward.1} parent=1 // pred_region
      _
    $region5: #{rnn_forward.1} parent=1 // pred_fallthru
      _
    // Predicated region
    $region6: #{rnn_forward.1} parent=1 // pred_check
      _
    $region7: #{rnn_forward.1} parent=1 // pred_check_branch
      %20 = sbr.rel (0) target = $region9
    $region8: #{rnn_forward.1} parent=1 // pred_region
      _
    $region9: #{rnn_forward.1} parent=1 // pred_fallthru
      _
    // Predicated region
    $region10: #{rnn_forward.1} parent=1 // pred_check
      _
    $region11: #{rnn_forward.1} parent=1 // pred_check_branch
      %22 = sbr.rel (0) target = $region13
    $region12: #{rnn_forward.1} parent=1 // pred_region
      _
    $region13: #{rnn_forward.1} parent=1 // pred_fallthru
      _
    // Predicated region
    $region14: #{rnn_forward.1} parent=1 // pred_check
      _
    $region15: #{rnn_forward.1} parent=1 // pred_check_branch
      %24 = sbr.rel (0) target = $region17
    $region16: #{rnn_forward.1} parent=1 // pred_region
      _
    $region17: #{rnn_forward.1} parent=1 // pred_fallthru
      _
    // Predicated region
    $region18: #{rnn_forward.1} parent=1 // pred_check
      _
    $region19: #{rnn_forward.1} parent=1 // pred_check_branch
      %26 = sbr.rel (0) target = $region21
    $region20: #{rnn_forward.1} parent=1 // pred_region
      _
    $region21: #{rnn_forward.1} parent=1 // pred_fallthru
      _
    // Predicated region
    $region22: #{rnn_forward.1} parent=1 // pred_check
      _
    $region23: #{rnn_forward.1} parent=1 // pred_check_branch
      %28 = sbr.rel (0) target = $region25
    $region24: #{rnn_forward.1} parent=1 // pred_region
      _
    $region25: #{rnn_forward.1} parent=1 // pred_fallthru
      _
    // Predicated region
    $region26: #{rnn_forward.1} parent=1 // pred_check
      _
    $region27: #{rnn_forward.1} parent=1 // pred_check_branch
      %30 = sbr.rel (0) target = $region29
    $region28: #{rnn_forward.1} parent=1 // pred_region
      _
    $region29: #{rnn_forward.1} parent=1 // pred_fallthru
      _
    %p31 = scmp.eq.s32.totalorder 0, 0
    // Predicated region
    $region30: #{rnn_forward.1} parent=1 // pred_check
      %p32 = pneg %p31
    $region31: #{rnn_forward.1} parent=1 // pred_check_branch
      %34 = sbr.rel (%p32) target = $region33
    $region32: #{rnn_forward.1} parent=1 // pred_region
      %v35 = vld [vmem:[%s1] sm:$0xff]
      %vm36 = vcmask 261120
      %37 = vst.msk [vmem:[#allocation4] sm:$0xff] %vm36, %v35
    $region33: #{rnn_forward.1} parent=1 // pred_fallthru
      _
    %v38 = vld [vmem:[%s0] sm:$0xff]
    %39 = vxpose.xlu0.b32.start [1/16] %v38, 128
    %40 = vxpose.xlu0.b32.cont [2/16] 0.0, 128
    %41 = vxpose.xlu0.b32.cont [3/16] 0.0, 128
    %42 = vxpose.xlu0.b32.cont [4/16] 0.0, 128
    %43 = vxpose.xlu0.b32.cont [5/16] 0.0, 128
    %44 = vxpose.xlu0.b32.cont [6/16] 0.0, 128
    %45 = vxpose.xlu0.b32.cont [7/16] 0.0, 128
    %46 = vxpose.xlu0.b32.cont [8/16] 0.0, 128
    %47 = vxpose.xlu0.b32.cont [9/16] 0.0, 128
    %48 = vxpose.xlu0.b32.cont [10/16] 0.0, 128
    %49 = vxpose.xlu0.b32.cont [11/16] 0.0, 128
    %50 = vxpose.xlu0.b32.cont [12/16] 0.0, 128
    %51 = vxpose.xlu0.b32.cont [13/16] 0.0, 128
    %52 = vxpose.xlu0.b32.cont [14/16] 0.0, 128
    %53 = vxpose.xlu0.b32.cont [15/16] 0.0, 128
    %54 = vxpose.xlu0.b32.end [16/16] 0.0, 128
    %v55 = vpop.trf.xlu0
    %v56 = vpop.trf.xlu0
    %v57 = vpop.trf.xlu0
    %v58 = vpop.trf.xlu0
    %v59 = vpop.trf.xlu0
    %v60 = vpop.trf.xlu0
    %v61 = vpop.trf.xlu0
    %v62 = vpop.trf.xlu0
    %v63 = vpop.trf.xlu0
    %v64 = vpop.trf.xlu0
    %v65 = vpop.trf.xlu0
    %v66 = vpop.trf.xlu0
    %v67 = vpop.trf.xlu0
    %v68 = vpop.trf.xlu0
    %v69 = vpop.trf.xlu0
    %v70 = vpop.trf.xlu0
    %v71 = vlaneseq
    %v72 = vshrl.u32 %v71, 7
    %v73 = vsub.s32 0, %v72
    %v74 = vrot.slane %v55, %v73
    %76 = vbcast.lane.b32.xlu0 %v74, 256
    %v77 = vpop.permute.xlu0 %76
    %v78 = vlaneseq
    %v79 = vshrl.u32 %v78, 7
    %v80 = vsub.s32 1, %v79
    %v81 = vrot.slane %v55, %v80
    %83 = vbcast.lane.b32.xlu0 %v81, 256
    %v84 = vpop.permute.xlu0 %83
    %v85 = vlaneseq
    %v86 = vshrl.u32 %v85, 7
    %v87 = vsub.s32 2, %v86
    %v88 = vrot.slane %v55, %v87
    %90 = vbcast.lane.b32.xlu0 %v88, 256
    %v91 = vpop.permute.xlu0 %90
    %v92 = vlaneseq
    %v93 = vshrl.u32 %v92, 7
    %v94 = vsub.s32 3, %v93
    %v95 = vrot.slane %v55, %v94
    %97 = vbcast.lane.b32.xlu0 %v95, 256
    %v98 = vpop.permute.xlu0 %97
    %v99 = vlaneseq
    %v100 = vshrl.u32 %v99, 7
    %v101 = vsub.s32 4, %v100
    %v102 = vrot.slane %v55, %v101
    %104 = vbcast.lane.b32.xlu0 %v102, 256
    %v105 = vpop.permute.xlu0 %104
    %v106 = vlaneseq
    %v107 = vshrl.u32 %v106, 7
    %v108 = vsub.s32 5, %v107
    %v109 = vrot.slane %v55, %v108
    %111 = vbcast.lane.b32.xlu0 %v109, 256
    %v112 = vpop.permute.xlu0 %111
    %v113 = vlaneseq
    %v114 = vshrl.u32 %v113, 7
    %v115 = vsub.s32 6, %v114
    %v116 = vrot.slane %v55, %v115
    %118 = vbcast.lane.b32.xlu0 %v116, 256
    %v119 = vpop.permute.xlu0 %118
    %v120 = vlaneseq
    %v121 = vshrl.u32 %v120, 7
    %v122 = vsub.s32 7, %v121
    %v123 = vrot.slane %v55, %v122
    %125 = vbcast.lane.b32.xlu0 %v123, 256
    %v126 = vpop.permute.xlu0 %125
    %v127 = vld [vmem:[%s2] sm:$0x1]
    %v129 = vlaneseq
    %v130 = vshrl.u32 %v129, 7
    %v131 = vsub.s32 0, %v130
    %v132 = vrot.slane %v127, %v131
    %v134 = vmul.f32 %v77, %v132
    %v135 = vmul.f32 %v84, %v132
    %v136 = vmul.f32 %v91, %v132
    %v137 = vmul.f32 %v98, %v132
    %v138 = vmul.f32 %v105, %v132
    %v139 = vmul.f32 %v112, %v132
    %v140 = vmul.f32 %v119, %v132
    %v141 = vmul.f32 %v126, %v132
    %v142 = vld [vmem:[%s4] sm:$0x1]
    %v144 = vlaneseq
    %v145 = vshrl.u32 %v144, 7
    %v146 = vsub.s32 0, %v145
    %v147 = vrot.slane %v142, %v146
    %v149 = vadd.f32 %v134, %v147
    %v150 = vadd.f32 %v135, %v147
    %v151 = vadd.f32 %v136, %v147
    %v152 = vadd.f32 %v137, %v147
    %v153 = vadd.f32 %v138, %v147
    %v154 = vadd.f32 %v139, %v147
    %v155 = vadd.f32 %v140, %v147
    %v156 = vadd.f32 %v141, %v147
    %vm157 = vcmask 261120
    %158 = vst.msk [vmem:[#allocation2] sm:$0xff] %vm157, %v149
    %159 = vst.msk [vmem:[#allocation2 + $0x8] sm:$0xff] %vm157, %v150
    %160 = vst.msk [vmem:[#allocation2 + $0x10] sm:$0xff] %vm157, %v151
    %161 = vst.msk [vmem:[#allocation2 + $0x18] sm:$0xff] %vm157, %v152
    %162 = vst.msk [vmem:[#allocation2 + $0x20] sm:$0xff] %vm157, %v153
    %163 = vst.msk [vmem:[#allocation2 + $0x28] sm:$0xff] %vm157, %v154
    %164 = vst.msk [vmem:[#allocation2 + $0x30] sm:$0xff] %vm157, %v155
    %165 = vst.msk [vmem:[#allocation2 + $0x38] sm:$0xff] %vm157, %v156
    %v166 = vld [vmem:[%s3] sm:$0xff]
    %v167 = vld [vmem:[%s3 + $0x8] sm:$0xff]
    %v168 = vld [vmem:[%s3 + $0x10] sm:$0xff]
    %v169 = vld [vmem:[%s3 + $0x18] sm:$0xff]
    %v170 = vld [vmem:[#allocation4] sm:$0xff]
    %v171 = vld [vmem:[#allocation2] sm:$0xff]
    %v173 = vsel %vm157, %v170, 0
    %175 = vmatprep.subr.mxu0 0.0
    %176 = vmatpush1.msra.mxu0 0.0
    %177 = vmatprep.subr.mxu0 0.0
    %178 = vmatpush1.msra.mxu0 0.0
    %179 = vmatprep.subr.mxu0 0.0
    %180 = vmatpush1.msra.mxu0 0.0
    %181 = vmatprep.subr.mxu0 0.0
    %182 = vmatpush1.msra.mxu0 0.0
    %183 = vmatprep.subr.mxu0 0.0
    %184 = vmatpush1.msra.mxu0 0.0
    %185 = vmatprep.subr.mxu0 0.0
    %186 = vmatpush1.msra.mxu0 0.0
    %187 = vmatprep.subr.mxu0 0.0
    %188 = vmatpush1.msra.mxu0 0.0
    %189 = vmatprep.subr.mxu0 0.0
    %190 = vmatpush1.msra.mxu0 0.0
    %191 = vmatprep.subr.mxu0 0.0
    %192 = vmatpush1.msra.mxu0 0.0
    %193 = vmatprep.subr.mxu0 0.0
    %194 = vmatpush1.msra.mxu0 0.0
    %195 = vmatprep.subr.mxu0 0.0
    %196 = vmatpush1.msra.mxu0 0.0
    %197 = vmatprep.subr.mxu0 0.0
    %198 = vmatpush1.msra.mxu0 0.0
    %199 = vmatprep.subr.mxu0 0.0
    %200 = vmatpush1.msra.mxu0 %v169
    %201 = vmatprep.subr.mxu0 0.0
    %202 = vmatpush1.msra.mxu0 %v168
    %203 = vmatprep.subr.mxu0 0.0
    %204 = vmatpush1.msra.mxu0 %v167
    %205 = vmatprep.subr.mxu0 0.0
    %206 = vmatpush1.msra.mxu0 %v166
    %207 = vmatprep.subr.mxu0 0.0
    %208 = vmatpush2.msra.mxu0 0.0
    %209 = vmatprep.subr.mxu0 0.0
    %210 = vmatpush2.msra.mxu0 0.0
    %211 = vmatprep.subr.mxu0 0.0
    %212 = vmatpush2.msra.mxu0 0.0
    %213 = vmatprep.subr.mxu0 0.0
    %214 = vmatpush2.msra.mxu0 0.0
    %215 = vmatprep.subr.mxu0 0.0
    %216 = vmatpush2.msra.mxu0 0.0
    %217 = vmatprep.subr.mxu0 0.0
    %218 = vmatpush2.msra.mxu0 0.0
    %219 = vmatprep.subr.mxu0 0.0
    %220 = vmatpush2.msra.mxu0 0.0
    %221 = vmatprep.subr.mxu0 0.0
    %222 = vmatpush2.msra.mxu0 0.0
    %223 = vmatprep.subr.mxu0 0.0
    %224 = vmatpush2.msra.mxu0 0.0
    %225 = vmatprep.subr.mxu0 0.0
    %226 = vmatpush2.msra.mxu0 0.0
    %227 = vmatprep.subr.mxu0 0.0
    %228 = vmatpush2.msra.mxu0 0.0
    %229 = vmatprep.subr.mxu0 0.0
    %230 = vmatpush2.msra.mxu0 0.0
    %231 = vmatprep.subr.mxu0 0.0
    %232 = vmatpush2.msra.mxu0 0.0
    %233 = vmatprep.subr.mxu0 0.0
    %234 = vmatpush2.msra.mxu0 0.0
    %235 = vmatprep.subr.mxu0 0.0
    %236 = vmatpush2.msra.mxu0 0.0
    %237 = vmatprep.subr.mxu0 0.0
    %238 = vmatpush2.msra.mxu0 0.0
    %239 = vmatprep.mubr.f32.mxu0 0.0
    %240 = vmatmul.mubr.f32.gmra.mxu0 %v173
    %v241 = vpop.f32.mrf.mxu0
    %v242 = vadd.f32 0.0, %v241
    %v243 = vpop.f32.mrf.mxu0
    %244 = vdwg.mxu0
    %v245 = vadd.f32 %v171, %v242
    %v246 = vtanh.pop %v245
    %247 = vst.msk [vmem:[#allocation3] sm:$0xff] %vm157, %v246
    %s248 = scalar_lea.vmem [#allocation2], 8
    %v249 = vld [vmem:[%s248] sm:$0xff]
    %v251 = vsel %vm157, %v246, 0
    %253 = vmatprep.subr.mxu0 0.0
    %254 = vmatpush1.msra.mxu0 0.0
    %255 = vmatprep.subr.mxu0 0.0
    %256 = vmatpush1.msra.mxu0 0.0
    %257 = vmatprep.subr.mxu0 0.0
    %258 = vmatpush1.msra.mxu0 0.0
    %259 = vmatprep.subr.mxu0 0.0
    %260 = vmatpush1.msra.mxu0 0.0
    %261 = vmatprep.subr.mxu0 0.0
    %262 = vmatpush1.msra.mxu0 0.0
    %263 = vmatprep.subr.mxu0 0.0
    %264 = vmatpush1.msra.mxu0 0.0
    %265 = vmatprep.subr.mxu0 0.0
    %266 = vmatpush1.msra.mxu0 0.0
    %267 = vmatprep.subr.mxu0 0.0
    %268 = vmatpush1.msra.mxu0 0.0
    %269 = vmatprep.subr.mxu0 0.0
    %270 = vmatpush1.msra.mxu0 0.0
    %271 = vmatprep.subr.mxu0 0.0
    %272 = vmatpush1.msra.mxu0 0.0
    %273 = vmatprep.subr.mxu0 0.0
    %274 = vmatpush1.msra.mxu0 0.0
    %275 = vmatprep.subr.mxu0 0.0
    %276 = vmatpush1.msra.mxu0 0.0
    %277 = vmatprep.subr.mxu0 0.0
    %278 = vmatpush1.msra.mxu0 %v169
    %279 = vmatprep.subr.mxu0 0.0
    %280 = vmatpush1.msra.mxu0 %v168
    %281 = vmatprep.subr.mxu0 0.0
    %282 = vmatpush1.msra.mxu0 %v167
    %283 = vmatprep.subr.mxu0 0.0
    %284 = vmatpush1.msra.mxu0 %v166
    %285 = vmatprep.subr.mxu0 0.0
    %286 = vmatpush2.msra.mxu0 0.0
    %287 = vmatprep.subr.mxu0 0.0
    %288 = vmatpush2.msra.mxu0 0.0
    %289 = vmatprep.subr.mxu0 0.0
    %290 = vmatpush2.msra.mxu0 0.0
    %291 = vmatprep.subr.mxu0 0.0
    %292 = vmatpush2.msra.mxu0 0.0
    %293 = vmatprep.subr.mxu0 0.0
    %294 = vmatpush2.msra.mxu0 0.0
    %295 = vmatprep.subr.mxu0 0.0
    %296 = vmatpush2.msra.mxu0 0.0
    %297 = vmatprep.subr.mxu0 0.0
    %298 = vmatpush2.msra.mxu0 0.0
    %299 = vmatprep.subr.mxu0 0.0
    %300 = vmatpush2.msra.mxu0 0.0
    %301 = vmatprep.subr.mxu0 0.0
    %302 = vmatpush2.msra.mxu0 0.0
    %303 = vmatprep.subr.mxu0 0.0
    %304 = vmatpush2.msra.mxu0 0.0
    %305 = vmatprep.subr.mxu0 0.0
    %306 = vmatpush2.msra.mxu0 0.0
    %307 = vmatprep.subr.mxu0 0.0
    %308 = vmatpush2.msra.mxu0 0.0
    %309 = vmatprep.subr.mxu0 0.0
    %310 = vmatpush2.msra.mxu0 0.0
    %311 = vmatprep.subr.mxu0 0.0
    %312 = vmatpush2.msra.mxu0 0.0
    %313 = vmatprep.subr.mxu0 0.0
    %314 = vmatpush2.msra.mxu0 0.0
    %315 = vmatprep.subr.mxu0 0.0
    %316 = vmatpush2.msra.mxu0 0.0
    %317 = vmatprep.mubr.f32.mxu0 0.0
    %318 = vmatmul.mubr.f32.gmra.mxu0 %v251
    %v319 = vpop.f32.mrf.mxu0
    %v320 = vadd.f32 0.0, %v319
    %v321 = vpop.f32.mrf.mxu0
    %322 = vdwg.mxu0
    %v323 = vadd.f32 %v249, %v320
    %v324 = vtanh.pop %v323
    %s325 = scalar_lea.vmem [#allocation3], 8
    %326 = vst.msk [vmem:[%s325] sm:$0xff] %vm157, %v324
    %s327 = scalar_lea.vmem [#allocation2], 16
    %v328 = vld [vmem:[%s327] sm:$0xff]
    %v330 = vsel %vm157, %v324, 0
    %332 = vmatprep.subr.mxu0 0.0
    %333 = vmatpush1.msra.mxu0 0.0
    %334 = vmatprep.subr.mxu0 0.0
    %335 = vmatpush1.msra.mxu0 0.0
    %336 = vmatprep.subr.mxu0 0.0
    %337 = vmatpush1.msra.mxu0 0.0
    %338 = vmatprep.subr.mxu0 0.0
    %339 = vmatpush1.msra.mxu0 0.0
    %340 = vmatprep.subr.mxu0 0.0
    %341 = vmatpush1.msra.mxu0 0.0
    %342 = vmatprep.subr.mxu0 0.0
    %343 = vmatpush1.msra.mxu0 0.0
    %344 = vmatprep.subr.mxu0 0.0
    %345 = vmatpush1.msra.mxu0 0.0
    %346 = vmatprep.subr.mxu0 0.0
    %347 = vmatpush1.msra.mxu0 0.0
    %348 = vmatprep.subr.mxu0 0.0
    %349 = vmatpush1.msra.mxu0 0.0
    %350 = vmatprep.subr.mxu0 0.0
    %351 = vmatpush1.msra.mxu0 0.0
    %352 = vmatprep.subr.mxu0 0.0
    %353 = vmatpush1.msra.mxu0 0.0
    %354 = vmatprep.subr.mxu0 0.0
    %355 = vmatpush1.msra.mxu0 0.0
    %356 = vmatprep.subr.mxu0 0.0
    %357 = vmatpush1.msra.mxu0 %v169
    %358 = vmatprep.subr.mxu0 0.0
    %359 = vmatpush1.msra.mxu0 %v168
    %360 = vmatprep.subr.mxu0 0.0
    %361 = vmatpush1.msra.mxu0 %v167
    %362 = vmatprep.subr.mxu0 0.0
    %363 = vmatpush1.msra.mxu0 %v166
    %364 = vmatprep.subr.mxu0 0.0
    %365 = vmatpush2.msra.mxu0 0.0
    %366 = vmatprep.subr.mxu0 0.0
    %367 = vmatpush2.msra.mxu0 0.0
    %368 = vmatprep.subr.mxu0 0.0
    %369 = vmatpush2.msra.mxu0 0.0
    %370 = vmatprep.subr.mxu0 0.0
    %371 = vmatpush2.msra.mxu0 0.0
    %372 = vmatprep.subr.mxu0 0.0
    %373 = vmatpush2.msra.mxu0 0.0
    %374 = vmatprep.subr.mxu0 0.0
    %375 = vmatpush2.msra.mxu0 0.0
    %376 = vmatprep.subr.mxu0 0.0
    %377 = vmatpush2.msra.mxu0 0.0
    %378 = vmatprep.subr.mxu0 0.0
    %379 = vmatpush2.msra.mxu0 0.0
    %380 = vmatprep.subr.mxu0 0.0
    %381 = vmatpush2.msra.mxu0 0.0
    %382 = vmatprep.subr.mxu0 0.0
    %383 = vmatpush2.msra.mxu0 0.0
    %384 = vmatprep.subr.mxu0 0.0
    %385 = vmatpush2.msra.mxu0 0.0
    %386 = vmatprep.subr.mxu0 0.0
    %387 = vmatpush2.msra.mxu0 0.0
    %388 = vmatprep.subr.mxu0 0.0
    %389 = vmatpush2.msra.mxu0 0.0
    %390 = vmatprep.subr.mxu0 0.0
    %391 = vmatpush2.msra.mxu0 0.0
    %392 = vmatprep.subr.mxu0 0.0
    %393 = vmatpush2.msra.mxu0 0.0
    %394 = vmatprep.subr.mxu0 0.0
    %395 = vmatpush2.msra.mxu0 0.0
    %396 = vmatprep.mubr.f32.mxu0 0.0
    %397 = vmatmul.mubr.f32.gmra.mxu0 %v330
    %v398 = vpop.f32.mrf.mxu0
    %v399 = vadd.f32 0.0, %v398
    %v400 = vpop.f32.mrf.mxu0
    %401 = vdwg.mxu0
    %v402 = vadd.f32 %v328, %v399
    %v403 = vtanh.pop %v402
    %s404 = scalar_lea.vmem [#allocation3], 16
    %405 = vst.msk [vmem:[%s404] sm:$0xff] %vm157, %v403
    %s406 = scalar_lea.vmem [#allocation2], 24
    %v407 = vld [vmem:[%s406] sm:$0xff]
    %v409 = vsel %vm157, %v403, 0
    %411 = vmatprep.subr.mxu0 0.0
    %412 = vmatpush1.msra.mxu0 0.0
    %413 = vmatprep.subr.mxu0 0.0
    %414 = vmatpush1.msra.mxu0 0.0
    %415 = vmatprep.subr.mxu0 0.0
    %416 = vmatpush1.msra.mxu0 0.0
    %417 = vmatprep.subr.mxu0 0.0
    %418 = vmatpush1.msra.mxu0 0.0
    %419 = vmatprep.subr.mxu0 0.0
    %420 = vmatpush1.msra.mxu0 0.0
    %421 = vmatprep.subr.mxu0 0.0
    %422 = vmatpush1.msra.mxu0 0.0
    %423 = vmatprep.subr.mxu0 0.0
    %424 = vmatpush1.msra.mxu0 0.0
    %425 = vmatprep.subr.mxu0 0.0
    %426 = vmatpush1.msra.mxu0 0.0
    %427 = vmatprep.subr.mxu0 0.0
    %428 = vmatpush1.msra.mxu0 0.0
    %429 = vmatprep.subr.mxu0 0.0
    %430 = vmatpush1.msra.mxu0 0.0
    %431 = vmatprep.subr.mxu0 0.0
    %432 = vmatpush1.msra.mxu0 0.0
    %433 = vmatprep.subr.mxu0 0.0
    %434 = vmatpush1.msra.mxu0 0.0
    %435 = vmatprep.subr.mxu0 0.0
    %436 = vmatpush1.msra.mxu0 %v169
    %437 = vmatprep.subr.mxu0 0.0
    %438 = vmatpush1.msra.mxu0 %v168
    %439 = vmatprep.subr.mxu0 0.0
    %440 = vmatpush1.msra.mxu0 %v167
    %441 = vmatprep.subr.mxu0 0.0
    %442 = vmatpush1.msra.mxu0 %v166
    %443 = vmatprep.subr.mxu0 0.0
    %444 = vmatpush2.msra.mxu0 0.0
    %445 = vmatprep.subr.mxu0 0.0
    %446 = vmatpush2.msra.mxu0 0.0
    %447 = vmatprep.subr.mxu0 0.0
    %448 = vmatpush2.msra.mxu0 0.0
    %449 = vmatprep.subr.mxu0 0.0
    %450 = vmatpush2.msra.mxu0 0.0
    %451 = vmatprep.subr.mxu0 0.0
    %452 = vmatpush2.msra.mxu0 0.0
    %453 = vmatprep.subr.mxu0 0.0
    %454 = vmatpush2.msra.mxu0 0.0
    %455 = vmatprep.subr.mxu0 0.0
    %456 = vmatpush2.msra.mxu0 0.0
    %457 = vmatprep.subr.mxu0 0.0
    %458 = vmatpush2.msra.mxu0 0.0
    %459 = vmatprep.subr.mxu0 0.0
    %460 = vmatpush2.msra.mxu0 0.0
    %461 = vmatprep.subr.mxu0 0.0
    %462 = vmatpush2.msra.mxu0 0.0
    %463 = vmatprep.subr.mxu0 0.0
    %464 = vmatpush2.msra.mxu0 0.0
    %465 = vmatprep.subr.mxu0 0.0
    %466 = vmatpush2.msra.mxu0 0.0
    %467 = vmatprep.subr.mxu0 0.0
    %468 = vmatpush2.msra.mxu0 0.0
    %469 = vmatprep.subr.mxu0 0.0
    %470 = vmatpush2.msra.mxu0 0.0
    %471 = vmatprep.subr.mxu0 0.0
    %472 = vmatpush2.msra.mxu0 0.0
    %473 = vmatprep.subr.mxu0 0.0
    %474 = vmatpush2.msra.mxu0 0.0
    %475 = vmatprep.mubr.f32.mxu0 0.0
    %476 = vmatmul.mubr.f32.gmra.mxu0 %v409
    %v477 = vpop.f32.mrf.mxu0
    %v478 = vadd.f32 0.0, %v477
    %v479 = vpop.f32.mrf.mxu0
    %480 = vdwg.mxu0
    %v481 = vadd.f32 %v407, %v478
    %v482 = vtanh.pop %v481
    %s483 = scalar_lea.vmem [#allocation3], 24
    %484 = vst.msk [vmem:[%s483] sm:$0xff] %vm157, %v482
    %s485 = scalar_lea.vmem [#allocation2], 32
    %v486 = vld [vmem:[%s485] sm:$0xff]
    %v488 = vsel %vm157, %v482, 0
    %490 = vmatprep.subr.mxu0 0.0
    %491 = vmatpush1.msra.mxu0 0.0
    %492 = vmatprep.subr.mxu0 0.0
    %493 = vmatpush1.msra.mxu0 0.0
    %494 = vmatprep.subr.mxu0 0.0
    %495 = vmatpush1.msra.mxu0 0.0
    %496 = vmatprep.subr.mxu0 0.0
    %497 = vmatpush1.msra.mxu0 0.0
    %498 = vmatprep.subr.mxu0 0.0
    %499 = vmatpush1.msra.mxu0 0.0
    %500 = vmatprep.subr.mxu0 0.0
    %501 = vmatpush1.msra.mxu0 0.0
    %502 = vmatprep.subr.mxu0 0.0
    %503 = vmatpush1.msra.mxu0 0.0
    %504 = vmatprep.subr.mxu0 0.0
    %505 = vmatpush1.msra.mxu0 0.0
    %506 = vmatprep.subr.mxu0 0.0
    %507 = vmatpush1.msra.mxu0 0.0
    %508 = vmatprep.subr.mxu0 0.0
    %509 = vmatpush1.msra.mxu0 0.0
    %510 = vmatprep.subr.mxu0 0.0
    %511 = vmatpush1.msra.mxu0 0.0
    %512 = vmatprep.subr.mxu0 0.0
    %513 = vmatpush1.msra.mxu0 0.0
    %514 = vmatprep.subr.mxu0 0.0
    %515 = vmatpush1.msra.mxu0 %v169
    %516 = vmatprep.subr.mxu0 0.0
    %517 = vmatpush1.msra.mxu0 %v168
    %518 = vmatprep.subr.mxu0 0.0
    %519 = vmatpush1.msra.mxu0 %v167
    %520 = vmatprep.subr.mxu0 0.0
    %521 = vmatpush1.msra.mxu0 %v166
    %522 = vmatprep.subr.mxu0 0.0
    %523 = vmatpush2.msra.mxu0 0.0
    %524 = vmatprep.subr.mxu0 0.0
    %525 = vmatpush2.msra.mxu0 0.0
    %526 = vmatprep.subr.mxu0 0.0
    %527 = vmatpush2.msra.mxu0 0.0
    %528 = vmatprep.subr.mxu0 0.0
    %529 = vmatpush2.msra.mxu0 0.0
    %530 = vmatprep.subr.mxu0 0.0
    %531 = vmatpush2.msra.mxu0 0.0
    %532 = vmatprep.subr.mxu0 0.0
    %533 = vmatpush2.msra.mxu0 0.0
    %534 = vmatprep.subr.mxu0 0.0
    %535 = vmatpush2.msra.mxu0 0.0
    %536 = vmatprep.subr.mxu0 0.0
    %537 = vmatpush2.msra.mxu0 0.0
    %538 = vmatprep.subr.mxu0 0.0
    %539 = vmatpush2.msra.mxu0 0.0
    %540 = vmatprep.subr.mxu0 0.0
    %541 = vmatpush2.msra.mxu0 0.0
    %542 = vmatprep.subr.mxu0 0.0
    %543 = vmatpush2.msra.mxu0 0.0
    %544 = vmatprep.subr.mxu0 0.0
    %545 = vmatpush2.msra.mxu0 0.0
    %546 = vmatprep.subr.mxu0 0.0
    %547 = vmatpush2.msra.mxu0 0.0
    %548 = vmatprep.subr.mxu0 0.0
    %549 = vmatpush2.msra.mxu0 0.0
    %550 = vmatprep.subr.mxu0 0.0
    %551 = vmatpush2.msra.mxu0 0.0
    %552 = vmatprep.subr.mxu0 0.0
    %553 = vmatpush2.msra.mxu0 0.0
    %554 = vmatprep.mubr.f32.mxu0 0.0
    %555 = vmatmul.mubr.f32.gmra.mxu0 %v488
    %v556 = vpop.f32.mrf.mxu0
    %v557 = vadd.f32 0.0, %v556
    %v558 = vpop.f32.mrf.mxu0
    %559 = vdwg.mxu0
    %v560 = vadd.f32 %v486, %v557
    %v561 = vtanh.pop %v560
    %s562 = scalar_lea.vmem [#allocation3], 32
    %563 = vst.msk [vmem:[%s562] sm:$0xff] %vm157, %v561
    %s564 = scalar_lea.vmem [#allocation2], 40
    %v565 = vld [vmem:[%s564] sm:$0xff]
    %v567 = vsel %vm157, %v561, 0
    %569 = vmatprep.subr.mxu0 0.0
    %570 = vmatpush1.msra.mxu0 0.0
    %571 = vmatprep.subr.mxu0 0.0
    %572 = vmatpush1.msra.mxu0 0.0
    %573 = vmatprep.subr.mxu0 0.0
    %574 = vmatpush1.msra.mxu0 0.0
    %575 = vmatprep.subr.mxu0 0.0
    %576 = vmatpush1.msra.mxu0 0.0
    %577 = vmatprep.subr.mxu0 0.0
    %578 = vmatpush1.msra.mxu0 0.0
    %579 = vmatprep.subr.mxu0 0.0
    %580 = vmatpush1.msra.mxu0 0.0
    %581 = vmatprep.subr.mxu0 0.0
    %582 = vmatpush1.msra.mxu0 0.0
    %583 = vmatprep.subr.mxu0 0.0
    %584 = vmatpush1.msra.mxu0 0.0
    %585 = vmatprep.subr.mxu0 0.0
    %586 = vmatpush1.msra.mxu0 0.0
    %587 = vmatprep.subr.mxu0 0.0
    %588 = vmatpush1.msra.mxu0 0.0
    %589 = vmatprep.subr.mxu0 0.0
    %590 = vmatpush1.msra.mxu0 0.0
    %591 = vmatprep.subr.mxu0 0.0
    %592 = vmatpush1.msra.mxu0 0.0
    %593 = vmatprep.subr.mxu0 0.0
    %594 = vmatpush1.msra.mxu0 %v169
    %595 = vmatprep.subr.mxu0 0.0
    %596 = vmatpush1.msra.mxu0 %v168
    %597 = vmatprep.subr.mxu0 0.0
    %598 = vmatpush1.msra.mxu0 %v167
    %599 = vmatprep.subr.mxu0 0.0
    %600 = vmatpush1.msra.mxu0 %v166
    %601 = vmatprep.subr.mxu0 0.0
    %602 = vmatpush2.msra.mxu0 0.0
    %603 = vmatprep.subr.mxu0 0.0
    %604 = vmatpush2.msra.mxu0 0.0
    %605 = vmatprep.subr.mxu0 0.0
    %606 = vmatpush2.msra.mxu0 0.0
    %607 = vmatprep.subr.mxu0 0.0
    %608 = vmatpush2.msra.mxu0 0.0
    %609 = vmatprep.subr.mxu0 0.0
    %610 = vmatpush2.msra.mxu0 0.0
    %611 = vmatprep.subr.mxu0 0.0
    %612 = vmatpush2.msra.mxu0 0.0
    %613 = vmatprep.subr.mxu0 0.0
    %614 = vmatpush2.msra.mxu0 0.0
    %615 = vmatprep.subr.mxu0 0.0
    %616 = vmatpush2.msra.mxu0 0.0
    %617 = vmatprep.subr.mxu0 0.0
    %618 = vmatpush2.msra.mxu0 0.0
    %619 = vmatprep.subr.mxu0 0.0
    %620 = vmatpush2.msra.mxu0 0.0
    %621 = vmatprep.subr.mxu0 0.0
    %622 = vmatpush2.msra.mxu0 0.0
    %623 = vmatprep.subr.mxu0 0.0
    %624 = vmatpush2.msra.mxu0 0.0
    %625 = vmatprep.subr.mxu0 0.0
    %626 = vmatpush2.msra.mxu0 0.0
    %627 = vmatprep.subr.mxu0 0.0
    %628 = vmatpush2.msra.mxu0 0.0
    %629 = vmatprep.subr.mxu0 0.0
    %630 = vmatpush2.msra.mxu0 0.0
    %631 = vmatprep.subr.mxu0 0.0
    %632 = vmatpush2.msra.mxu0 0.0
    %633 = vmatprep.mubr.f32.mxu0 0.0
    %634 = vmatmul.mubr.f32.gmra.mxu0 %v567
    %v635 = vpop.f32.mrf.mxu0
    %v636 = vadd.f32 0.0, %v635
    %v637 = vpop.f32.mrf.mxu0
    %638 = vdwg.mxu0
    %v639 = vadd.f32 %v565, %v636
    %v640 = vtanh.pop %v639
    %s641 = scalar_lea.vmem [#allocation3], 40
    %642 = vst.msk [vmem:[%s641] sm:$0xff] %vm157, %v640
    %s643 = scalar_lea.vmem [#allocation2], 48
    %v644 = vld [vmem:[%s643] sm:$0xff]
    %v646 = vsel %vm157, %v640, 0
    %648 = vmatprep.subr.mxu0 0.0
    %649 = vmatpush1.msra.mxu0 0.0
    %650 = vmatprep.subr.mxu0 0.0
    %651 = vmatpush1.msra.mxu0 0.0
    %652 = vmatprep.subr.mxu0 0.0
    %653 = vmatpush1.msra.mxu0 0.0
    %654 = vmatprep.subr.mxu0 0.0
    %655 = vmatpush1.msra.mxu0 0.0
    %656 = vmatprep.subr.mxu0 0.0
    %657 = vmatpush1.msra.mxu0 0.0
    %658 = vmatprep.subr.mxu0 0.0
    %659 = vmatpush1.msra.mxu0 0.0
    %660 = vmatprep.subr.mxu0 0.0
    %661 = vmatpush1.msra.mxu0 0.0
    %662 = vmatprep.subr.mxu0 0.0
    %663 = vmatpush1.msra.mxu0 0.0
    %664 = vmatprep.subr.mxu0 0.0
    %665 = vmatpush1.msra.mxu0 0.0
    %666 = vmatprep.subr.mxu0 0.0
    %667 = vmatpush1.msra.mxu0 0.0
    %668 = vmatprep.subr.mxu0 0.0
    %669 = vmatpush1.msra.mxu0 0.0
    %670 = vmatprep.subr.mxu0 0.0
    %671 = vmatpush1.msra.mxu0 0.0
    %672 = vmatprep.subr.mxu0 0.0
    %673 = vmatpush1.msra.mxu0 %v169
    %674 = vmatprep.subr.mxu0 0.0
    %675 = vmatpush1.msra.mxu0 %v168
    %676 = vmatprep.subr.mxu0 0.0
    %677 = vmatpush1.msra.mxu0 %v167
    %678 = vmatprep.subr.mxu0 0.0
    %679 = vmatpush1.msra.mxu0 %v166
    %680 = vmatprep.subr.mxu0 0.0
    %681 = vmatpush2.msra.mxu0 0.0
    %682 = vmatprep.subr.mxu0 0.0
    %683 = vmatpush2.msra.mxu0 0.0
    %684 = vmatprep.subr.mxu0 0.0
    %685 = vmatpush2.msra.mxu0 0.0
    %686 = vmatprep.subr.mxu0 0.0
    %687 = vmatpush2.msra.mxu0 0.0
    %688 = vmatprep.subr.mxu0 0.0
    %689 = vmatpush2.msra.mxu0 0.0
    %690 = vmatprep.subr.mxu0 0.0
    %691 = vmatpush2.msra.mxu0 0.0
    %692 = vmatprep.subr.mxu0 0.0
    %693 = vmatpush2.msra.mxu0 0.0
    %694 = vmatprep.subr.mxu0 0.0
    %695 = vmatpush2.msra.mxu0 0.0
    %696 = vmatprep.subr.mxu0 0.0
    %697 = vmatpush2.msra.mxu0 0.0
    %698 = vmatprep.subr.mxu0 0.0
    %699 = vmatpush2.msra.mxu0 0.0
    %700 = vmatprep.subr.mxu0 0.0
    %701 = vmatpush2.msra.mxu0 0.0
    %702 = vmatprep.subr.mxu0 0.0
    %703 = vmatpush2.msra.mxu0 0.0
    %704 = vmatprep.subr.mxu0 0.0
    %705 = vmatpush2.msra.mxu0 0.0
    %706 = vmatprep.subr.mxu0 0.0
    %707 = vmatpush2.msra.mxu0 0.0
    %708 = vmatprep.subr.mxu0 0.0
    %709 = vmatpush2.msra.mxu0 0.0
    %710 = vmatprep.subr.mxu0 0.0
    %711 = vmatpush2.msra.mxu0 0.0
    %712 = vmatprep.mubr.f32.mxu0 0.0
    %713 = vmatmul.mubr.f32.gmra.mxu0 %v646
    %v714 = vpop.f32.mrf.mxu0
    %v715 = vadd.f32 0.0, %v714
    %v716 = vpop.f32.mrf.mxu0
    %717 = vdwg.mxu0
    %v718 = vadd.f32 %v644, %v715
    %v719 = vtanh.pop %v718
    %s720 = scalar_lea.vmem [#allocation3], 48
    %721 = vst.msk [vmem:[%s720] sm:$0xff] %vm157, %v719
    %s722 = scalar_lea.vmem [#allocation2], 56
    %v723 = vld [vmem:[%s722] sm:$0xff]
    %v725 = vsel %vm157, %v719, 0
    %727 = vmatprep.subr.mxu0 0.0
    %728 = vmatpush1.msra.mxu0 0.0
    %729 = vmatprep.subr.mxu0 0.0
    %730 = vmatpush1.msra.mxu0 0.0
    %731 = vmatprep.subr.mxu0 0.0
    %732 = vmatpush1.msra.mxu0 0.0
    %733 = vmatprep.subr.mxu0 0.0
    %734 = vmatpush1.msra.mxu0 0.0
    %735 = vmatprep.subr.mxu0 0.0
    %736 = vmatpush1.msra.mxu0 0.0
    %737 = vmatprep.subr.mxu0 0.0
    %738 = vmatpush1.msra.mxu0 0.0
    %739 = vmatprep.subr.mxu0 0.0
    %740 = vmatpush1.msra.mxu0 0.0
    %741 = vmatprep.subr.mxu0 0.0
    %742 = vmatpush1.msra.mxu0 0.0
    %743 = vmatprep.subr.mxu0 0.0
    %744 = vmatpush1.msra.mxu0 0.0
    %745 = vmatprep.subr.mxu0 0.0
    %746 = vmatpush1.msra.mxu0 0.0
    %747 = vmatprep.subr.mxu0 0.0
    %748 = vmatpush1.msra.mxu0 0.0
    %749 = vmatprep.subr.mxu0 0.0
    %750 = vmatpush1.msra.mxu0 0.0
    %751 = vmatprep.subr.mxu0 0.0
    %752 = vmatpush1.msra.mxu0 %v169
    %753 = vmatprep.subr.mxu0 0.0
    %754 = vmatpush1.msra.mxu0 %v168
    %755 = vmatprep.subr.mxu0 0.0
    %756 = vmatpush1.msra.mxu0 %v167
    %757 = vmatprep.subr.mxu0 0.0
    %758 = vmatpush1.msra.mxu0 %v166
    %759 = vmatprep.subr.mxu0 0.0
    %760 = vmatpush2.msra.mxu0 0.0
    %761 = vmatprep.subr.mxu0 0.0
    %762 = vmatpush2.msra.mxu0 0.0
    %763 = vmatprep.subr.mxu0 0.0
    %764 = vmatpush2.msra.mxu0 0.0
    %765 = vmatprep.subr.mxu0 0.0
    %766 = vmatpush2.msra.mxu0 0.0
    %767 = vmatprep.subr.mxu0 0.0
    %768 = vmatpush2.msra.mxu0 0.0
    %769 = vmatprep.subr.mxu0 0.0
    %770 = vmatpush2.msra.mxu0 0.0
    %771 = vmatprep.subr.mxu0 0.0
    %772 = vmatpush2.msra.mxu0 0.0
    %773 = vmatprep.subr.mxu0 0.0
    %774 = vmatpush2.msra.mxu0 0.0
    %775 = vmatprep.subr.mxu0 0.0
    %776 = vmatpush2.msra.mxu0 0.0
    %777 = vmatprep.subr.mxu0 0.0
    %778 = vmatpush2.msra.mxu0 0.0
    %779 = vmatprep.subr.mxu0 0.0
    %780 = vmatpush2.msra.mxu0 0.0
    %781 = vmatprep.subr.mxu0 0.0
    %782 = vmatpush2.msra.mxu0 0.0
    %783 = vmatprep.subr.mxu0 0.0
    %784 = vmatpush2.msra.mxu0 0.0
    %785 = vmatprep.subr.mxu0 0.0
    %786 = vmatpush2.msra.mxu0 0.0
    %787 = vmatprep.subr.mxu0 0.0
    %788 = vmatpush2.msra.mxu0 0.0
    %789 = vmatprep.subr.mxu0 0.0
    %790 = vmatpush2.msra.mxu0 0.0
    %791 = vmatprep.mubr.f32.mxu0 0.0
    %792 = vmatmul.mubr.f32.gmra.mxu0 %v725
    %v793 = vpop.f32.mrf.mxu0
    %v794 = vadd.f32 0.0, %v793
    %v795 = vpop.f32.mrf.mxu0
    %796 = vdwg.mxu0
    %v797 = vadd.f32 %v723, %v794
    %v798 = vtanh.pop %v797
    %s799 = scalar_lea.vmem [#allocation3], 56
    %800 = vst.msk [vmem:[%s799] sm:$0xff] %vm157, %v798
    %801 = vst.msk [vmem:[#allocation4] sm:$0xff] %vm157, %v798
    %802 = vst.msk [vmem:[#allocation8] sm:$0xff] %vm157, %v798
    %v803 = vld [vmem:[#allocation3] sm:$0xff]
    %v804 = vld [vmem:[#allocation3 + $0x8] sm:$0xff]
    %v805 = vld [vmem:[#allocation3 + $0x10] sm:$0xff]
    %v806 = vld [vmem:[#allocation3 + $0x18] sm:$0xff]
    %v807 = vld [vmem:[#allocation3 + $0x20] sm:$0xff]
    %v808 = vld [vmem:[#allocation3 + $0x28] sm:$0xff]
    %v809 = vld [vmem:[#allocation3 + $0x30] sm:$0xff]
    %v810 = vld [vmem:[#allocation3 + $0x38] sm:$0xff]
    %v811 = vld [vmem:[%s5] sm:$0x1]
    %v813 = vlaneseq
    %v814 = vshrl.u32 %v813, 7
    %v815 = vsub.s32 0, %v814
    %v816 = vrot.slane %v811, %v815
    %v818 = vmul.f32 %v803, %v816
    %v819 = vmul.f32 %v804, %v816
    %v820 = vmul.f32 %v805, %v816
    %v821 = vmul.f32 %v806, %v816
    %v822 = vmul.f32 %v807, %v816
    %v823 = vmul.f32 %v808, %v816
    %v824 = vmul.f32 %v809, %v816
    %v825 = vmul.f32 %v810, %v816
    %v826 = vsel %vm157, %v818, 0.0
    %827 = vadd.xlane.f32.xlu0 %v826
    %v828 = vpop.xlane.xlu0 %827
    %v829 = vsel %vm157, %v819, 0.0
    %830 = vadd.xlane.f32.xlu0 %v829
    %v831 = vpop.xlane.xlu0 %830
    %v832 = vsel %vm157, %v820, 0.0
    %833 = vadd.xlane.f32.xlu0 %v832
    %v834 = vpop.xlane.xlu0 %833
    %v835 = vsel %vm157, %v821, 0.0
    %836 = vadd.xlane.f32.xlu0 %v835
    %v837 = vpop.xlane.xlu0 %836
    %v838 = vsel %vm157, %v822, 0.0
    %839 = vadd.xlane.f32.xlu0 %v838
    %v840 = vpop.xlane.xlu0 %839
    %v841 = vsel %vm157, %v823, 0.0
    %842 = vadd.xlane.f32.xlu0 %v841
    %v843 = vpop.xlane.xlu0 %842
    %v844 = vsel %vm157, %v824, 0.0
    %845 = vadd.xlane.f32.xlu0 %v844
    %v846 = vpop.xlane.xlu0 %845
    %v847 = vsel %vm157, %v825, 0.0
    %848 = vadd.xlane.f32.xlu0 %v847
    %v849 = vpop.xlane.xlu0 %848
    %v858 = vlaneseq
    %v859 = vand.u32 %v858, 127
    %v860 = vlaneseq
    %v861 = vshrl.u32 %v860, 7
    %v862 = vsub.s32 %v859, %v861
    %v863 = vrot.slane %v828, %v862
    %v864 = vlaneseq
    %v865 = vshrl.u32 %v864, 7
    %v866 = vsub.s32 %v859, %v865
    %v867 = vrot.slane %v831, %v866
    %v868 = vlaneseq
    %v869 = vshrl.u32 %v868, 7
    %v870 = vsub.s32 %v859, %v869
    %v871 = vrot.slane %v834, %v870
    %v872 = vlaneseq
    %v873 = vshrl.u32 %v872, 7
    %v874 = vsub.s32 %v859, %v873
    %v875 = vrot.slane %v837, %v874
    %v876 = vlaneseq
    %v877 = vshrl.u32 %v876, 7
    %v878 = vsub.s32 %v859, %v877
    %v879 = vrot.slane %v840, %v878
    %v880 = vlaneseq
    %v881 = vshrl.u32 %v880, 7
    %v882 = vsub.s32 %v859, %v881
    %v883 = vrot.slane %v843, %v882
    %v884 = vlaneseq
    %v885 = vshrl.u32 %v884, 7
    %v886 = vsub.s32 %v859, %v885
    %v887 = vrot.slane %v846, %v886
    %v888 = vlaneseq
    %v889 = vshrl.u32 %v888, 7
    %v890 = vsub.s32 %v859, %v889
    %v891 = vrot.slane %v849, %v890
    %vm892 = vcmask 1041409
    %v893 = vsel %vm892, %v867, %v863
    %vm894 = vcmask 1042434
    %v895 = vsel %vm894, %v871, %v893
    %vm896 = vcmask 1043459
    %v897 = vsel %vm896, %v875, %v895
    %vm898 = vcmask 1044484
    %v899 = vsel %vm898, %v879, %v897
    %vm900 = vcmask 1045509
    %v901 = vsel %vm900, %v883, %v899
    %vm902 = vcmask 1046534
    %v903 = vsel %vm902, %v887, %v901
    %vm904 = vcmask 1047559
    %v905 = vsel %vm904, %v891, %v903
    %907 = vxpose.xlu0.b32.start [1/16] %v905, 128
    %908 = vxpose.xlu0.b32.cont [2/16] 0.0, 128
    %909 = vxpose.xlu0.b32.cont [3/16] 0.0, 128
    %910 = vxpose.xlu0.b32.cont [4/16] 0.0, 128
    %911 = vxpose.xlu0.b32.cont [5/16] 0.0, 128
    %912 = vxpose.xlu0.b32.cont [6/16] 0.0, 128
    %913 = vxpose.xlu0.b32.cont [7/16] 0.0, 128
    %914 = vxpose.xlu0.b32.cont [8/16] 0.0, 128
    %915 = vxpose.xlu0.b32.cont [9/16] 0.0, 128
    %916 = vxpose.xlu0.b32.cont [10/16] 0.0, 128
    %917 = vxpose.xlu0.b32.cont [11/16] 0.0, 128
    %918 = vxpose.xlu0.b32.cont [12/16] 0.0, 128
    %919 = vxpose.xlu0.b32.cont [13/16] 0.0, 128
    %920 = vxpose.xlu0.b32.cont [14/16] 0.0, 128
    %921 = vxpose.xlu0.b32.cont [15/16] 0.0, 128
    %922 = vxpose.xlu0.b32.end [16/16] 0.0, 128
    %v923 = vpop.trf.xlu0
    %v924 = vpop.trf.xlu0
    %v925 = vpop.trf.xlu0
    %v926 = vpop.trf.xlu0
    %v927 = vpop.trf.xlu0
    %v928 = vpop.trf.xlu0
    %v929 = vpop.trf.xlu0
    %v930 = vpop.trf.xlu0
    %v931 = vpop.trf.xlu0
    %v932 = vpop.trf.xlu0
    %v933 = vpop.trf.xlu0
    %v934 = vpop.trf.xlu0
    %v935 = vpop.trf.xlu0
    %v936 = vpop.trf.xlu0
    %v937 = vpop.trf.xlu0
    %v938 = vpop.trf.xlu0
    %s939 = sld [smem:[#allocation5]]
    %v940 = vstv %s939
    %v941 = vadd.f32 %v923, %v940
    %vm942 = vcmask 64512
    %943 = vst.msk [vmem:[#allocation6] sm:$0xff] %vm942, %v941
    // Predicated region
    $region34: #{rnn_forward.1} parent=1 // pred_check
      _
    $region35: #{rnn_forward.1} parent=1 // pred_check_branch
      %945 = sbr.rel (0) target = $region37
    $region36: #{rnn_forward.1} parent=1 // pred_region
      %s947 = ssub.s32 128, 128
      %948 = vsyncadd [#allocation7], %s947
      %s950 = sshll.u32 [#allocation6], 4
      %s951 = int_to_ptr.vmem [resolvable:$true] %s950
      %953 = dma.vmem_to_hbm [thread:$0]  %s951, 128, %s7, [#allocation7]
    $region37: #{rnn_forward.1} parent=1 // pred_fallthru
      _
    // Predicated region
    $region38: #{rnn_forward.1} parent=1 // pred_check
      _
    $region39: #{rnn_forward.1} parent=1 // pred_check_branch
      %955 = sbr.rel (0) target = $region41
    $region40: #{rnn_forward.1} parent=1 // pred_region
      %s957 = ssub.s32 128, 128
      %958 = vsyncadd [#allocation9], %s957
      %s960 = sshll.u32 [#allocation8], 4
      %s961 = int_to_ptr.vmem [resolvable:$true] %s960
      %963 = dma.vmem_to_hbm [thread:$0]  %s961, 128, %s8, [#allocation9]
    $region41: #{rnn_forward.1} parent=1 // pred_fallthru
      _
    // Predicated region
    $region42: #{rnn_forward.1} parent=1 // pred_check
      _
    $region43: #{rnn_forward.1} parent=1 // pred_check_branch
      %965 = sbr.rel (0) target = $region45
    $region44: #{rnn_forward.1} parent=1 // pred_region
      %966 = dma.done [#allocation7], 128
    $region45: #{rnn_forward.1} parent=1 // pred_fallthru
      _
    // Predicated region
    $region46: #{rnn_forward.1} parent=1 // pred_check
      _
    $region47: #{rnn_forward.1} parent=1 // pred_check_branch
      %968 = sbr.rel (0) target = $region49
    $region48: #{rnn_forward.1} parent=1 // pred_region
      %969 = dma.done [#allocation9], 128
    $region49: #{rnn_forward.1} parent=1 // pred_fallthru
      _
    %970 = vsyncpa [#allocation7], 1
    %971 = vsyncpa [#allocation9], 1

</llo_original>
